<compile_context>
chip_gen: v5e
topology: v5e:2x2
jax: 0.10.0
libtpu: 0.0.40
codegen_flags: <defaults>
</compile_context>

<pallas_src>
import functools

import jax
import jax.numpy as jnp
from jax import lax
from jax.experimental import pallas as pl
from jax.experimental.pallas import tpu as pltpu


def _cdiv(a, b):
    return -(-a // b)


def _dice_sums_kernel(pred_ref, tgt_ref, inter_out_ref, union_out_ref,
                      inter_sc, union_sc, *, hw, tile_hw, tiles_per_split,
                      has_pad):
    s = pl.program_id(1)
    t = pl.program_id(2)
    nt = pl.num_programs(2)

    @pl.when(t == 0)
    def _():
        inter_sc[...] = jnp.zeros_like(inter_sc)
        union_sc[...] = jnp.zeros_like(union_sc)

    logits = pred_ref[...].astype(jnp.float32)            # (1, C, R, 128)
    _, C, R, L = logits.shape

    # numerically stable softmax over channels (non-minor axis -> VPU ops)
    m = jnp.max(logits, axis=1, keepdims=True)            # (1, 1, R, 128)
    e = jnp.exp(logits - m)                               # (1, C, R, 128)
    denom = jnp.sum(e, axis=1, keepdims=True)             # (1, 1, R, 128)
    p = e * pl.reciprocal(denom, approx=True)             # (1, C, R, 128)

    # one-hot(target) built in-register: channel iota vs target labels
    tgt = tgt_ref[...]                                    # (1, 1, R, 128) int32
    ch = lax.broadcasted_iota(jnp.int32, (1, C, R, L), 1)
    onehot = (ch == tgt).astype(jnp.float32)              # (1, C, R, 128)

    inter_c = p * onehot
    union_c = p + onehot

    if has_pad:
        gidx = s * tiles_per_split + t                    # global HW tile idx
        first_pad_tile = hw // tile_hw                    # python int

        @pl.when(gidx < first_pad_tile)
        def _():                                          # interior: no mask
            inter_sc[...] += inter_c
            union_sc[...] += union_c

        @pl.when(gidx >= first_pad_tile)
        def _():                                          # tail: mask padding
            row = lax.broadcasted_iota(jnp.int32, (1, 1, R, L), 2)
            lane = lax.broadcasted_iota(jnp.int32, (1, 1, R, L), 3)
            col = gidx * tile_hw + row * L + lane
            valid = (col < hw).astype(jnp.float32)
            inter_sc[...] += inter_c * valid
            union_sc[...] += union_c * valid
    else:
        inter_sc[...] += inter_c
        union_sc[...] += union_c

    @pl.when(t == nt - 1)
    def _():
        # single sublane (XLU) reduce per (batch, split); tiny lane-dense out
        inter_out_ref[...] = jnp.sum(inter_sc[...], axis=2)   # (1, C, 128)
        union_out_ref[...] = jnp.sum(union_sc[...], axis=2)


def dice_loss(pred_nchw, target_bhw, smooth=1.0, tile_bytes=2 * 1024 * 1024,
              hw_split=2):
    """pred_nchw: [B, C, H, W] float logits; target_bhw: [B, H, W] int labels."""
    B, C, H, W = pred_nchw.shape
    HW = H * W
    itemsize = jnp.dtype(pred_nchw.dtype).itemsize

    # --- tiling: rows of 128 lanes; R rows (multiple of 8) per grid step ---
    rows_raw = _cdiv(HW, 128)
    r = max(8, (tile_bytes // (C * 128 * itemsize)) // 8 * 8)
    r = min(r, _cdiv(rows_raw, 8) * 8)          # don't tile past the data
    tiles_needed = _cdiv(rows_raw, r)
    n_splits = max(1, min(hw_split, tiles_needed))   # extra parallel axis (v7x)
    tiles_per_split = _cdiv(tiles_needed, n_splits)
    total_tiles = tiles_per_split * n_splits
    rows_pad = total_tiles * r
    hw_pad = rows_pad * 128
    tile_hw = r * 128

    # --- layout: reshape-only (no transpose) straight from native NCHW ---
    pred = pred_nchw.reshape(B, C, HW)
    tgt = target_bhw.reshape(B, 1, HW).astype(jnp.int32)
    if hw_pad != HW:
        pred = jnp.pad(pred, ((0, 0), (0, 0), (0, hw_pad - HW)))
        tgt = jnp.pad(tgt, ((0, 0), (0, 0), (0, hw_pad - HW)))
    pred = pred.reshape(B, C, rows_pad, 128)
    tgt = tgt.reshape(B, 1, rows_pad, 128)

    kernel = functools.partial(
        _dice_sums_kernel, hw=HW, tile_hw=tile_hw,
        tiles_per_split=tiles_per_split, has_pad=(hw_pad != HW))

    # VMEM budget: double-buffered pred/tgt blocks + 2 resident accumulators.
    pred_blk = C * r * 128 * itemsize
    tgt_blk = r * 128 * 4
    acc = 2 * C * r * 128 * 4
    need = 2 * pred_blk + 2 * tgt_blk + acc + 4 * C * 128 * 4 + (1 << 20)
    vmem_limit = min(max(int(need * 1.5), 32 * 1024 * 1024), 64 * 1024 * 1024)

    tps = tiles_per_split
    ns = n_splits

    inter_p, union_p = pl.pallas_call(
        kernel,
        out_shape=(
            jax.ShapeDtypeStruct((B * ns, C, 128), jnp.float32),
            jax.ShapeDtypeStruct((B * ns, C, 128), jnp.float32),
        ),
        grid_spec=pltpu.PrefetchScalarGridSpec(
            num_scalar_prefetch=0,
            grid=(B, ns, tps),
            in_specs=[
                pl.BlockSpec((1, C, r, 128),
                             lambda b, s, t: (b, 0, s * tps + t, 0)),
                pl.BlockSpec((1, 1, r, 128),
                             lambda b, s, t: (b, 0, s * tps + t, 0)),
            ],
            out_specs=[
                pl.BlockSpec((1, C, 128), lambda b, s, t: (b * ns + s, 0, 0)),
                pl.BlockSpec((1, C, 128), lambda b, s, t: (b * ns + s, 0, 0)),
            ],
            scratch_shapes=[
                pltpu.VMEM((1, C, r, 128), jnp.float32),
                pltpu.VMEM((1, C, r, 128), jnp.float32),
            ],
        ),
        compiler_params=pltpu.CompilerParams(
            dimension_semantics=("parallel", "parallel", "arbitrary"),
            vmem_limit_bytes=vmem_limit,
        ),
    )(pred, tgt)

    # Tiny epilogue: reduce (B*n_splits, C, 128) partials + dice combine.
    inter = jnp.sum(inter_p, axis=(0, 2))                 # (C,)
    union = jnp.sum(union_p, axis=(0, 2))                 # (C,)
    dice = (2.0 * inter + smooth) / (union + smooth)
    return jnp.mean(1.0 - dice)


if __name__ == "__main__":
    key = jax.random.PRNGKey(0)
    kp, kt = jax.random.split(key)

    B, C, H, W = 2, 4, 16, 16
    pred = jax.random.normal(kp, (B, C, H, W), dtype=jnp.float32)
    target = jax.random.randint(kt, (B, H, W), 0, C, dtype=jnp.int32)

    loss = dice_loss(pred, target, smooth=1.0)
    jax.block_until_ready(loss)

    # reference check in plain JAX (same math as the PyTorch module)
    p = jax.nn.softmax(pred, axis=1)
    oh = jnp.transpose(jax.nn.one_hot(target, C, dtype=jnp.float32), (0, 3, 1, 2))
    inter_ref = jnp.sum(p * oh, axis=(0, 2, 3))
    union_ref = jnp.sum(p + oh, axis=(0, 2, 3))
    loss_ref = jnp.mean(1.0 - (2.0 * inter_ref + 1.0) / (union_ref + 1.0))
    # approx reciprocal (EUP vrcp) in the softmax denominator -> loosened tol
    assert jnp.allclose(loss, loss_ref, atol=2e-3, rtol=2e-3), (loss, loss_ref)

    print("KERNEL_OK")
</pallas_src>

<mosaic_0001>
module attributes {stable_mosaic.version = 11 : i64} {
  func.func @_dice_sums_kernel(%arg0: i32, %arg1: i32, %arg2: i32, %arg3: memref<1x4x8x128xf32, #tpu.memory_space<vmem>>, %arg4: memref<1x1x8x128xi32, #tpu.memory_space<vmem>>, %arg5: memref<1x4x128xf32, #tpu.memory_space<vmem>>, %arg6: memref<1x4x128xf32, #tpu.memory_space<vmem>>, %arg7: memref<1x4x8x128xf32, #tpu.memory_space<vmem>>, %arg8: memref<1x4x8x128xf32, #tpu.memory_space<vmem>>) attributes {dimension_semantics = [#tpu.dimension_semantics<parallel>, #tpu.dimension_semantics<parallel>, #tpu.dimension_semantics<arbitrary>], iteration_bounds = array<i64: 2, 1, 1>, scalar_prefetch = 0 : i64, scratch_operands = 2 : i64, tpu.core_type = #tpu.core_type<tc>, window_params = [{transform_indices = @transform_0, window_bounds = array<i64: 1, 4, 8, 128>}, {transform_indices = @transform_1, window_bounds = array<i64: 1, 1, 8, 128>}, {transform_indices = @transform_2, window_bounds = array<i64: 1, 4, 128>}, {transform_indices = @transform_3, window_bounds = array<i64: 1, 4, 128>}]} {
    %c0_i32 = arith.constant 0 : i32
    %0 = arith.cmpi eq, %arg2, %c0_i32 : i32
    %1 = arith.extui %0 : i1 to i32
    %c0_i32_0 = arith.constant 0 : i32
    %2 = arith.cmpi ne, %1, %c0_i32_0 : i32
    scf.if %2 {
      %cst_15 = arith.constant 0.000000e+00 : f32
      %33 = vector.broadcast %cst_15 : f32 to vector<1x4x8x128xf32>
      %c0_16 = arith.constant 0 : index
      %c0_17 = arith.constant 0 : index
      %c0_18 = arith.constant 0 : index
      %c0_19 = arith.constant 0 : index
      %34 = vector.load %arg7[%c0_16, %c0_17, %c0_18, %c0_19] : memref<1x4x8x128xf32, #tpu.memory_space<vmem>>, vector<1x4x8x128xf32>
      tpu.vector_store %arg7[%c0_16, %c0_17, %c0_18, %c0_19], %33 {strides = array<i32>} : memref<1x4x8x128xf32, #tpu.memory_space<vmem>>, vector<1x4x8x128xf32>,
      %cst_20 = arith.constant 0.000000e+00 : f32
      %35 = vector.broadcast %cst_20 : f32 to vector<1x4x8x128xf32>
      %c0_21 = arith.constant 0 : index
      %c0_22 = arith.constant 0 : index
      %c0_23 = arith.constant 0 : index
      %c0_24 = arith.constant 0 : index
      %36 = vector.load %arg8[%c0_21, %c0_22, %c0_23, %c0_24] : memref<1x4x8x128xf32, #tpu.memory_space<vmem>>, vector<1x4x8x128xf32>
      tpu.vector_store %arg8[%c0_21, %c0_22, %c0_23, %c0_24], %35 {strides = array<i32>} : memref<1x4x8x128xf32, #tpu.memory_space<vmem>>, vector<1x4x8x128xf32>,
    } else {
    }
    %c0 = arith.constant 0 : index
    %c0_1 = arith.constant 0 : index
    %c0_2 = arith.constant 0 : index
    %c0_3 = arith.constant 0 : index
    %3 = vector.load %arg3[%c0, %c0_1, %c0_2, %c0_3] : memref<1x4x8x128xf32, #tpu.memory_space<vmem>>, vector<1x4x8x128xf32>
    %cst = arith.constant dense<0xFF800000> : vector<1x8x128xf32>
    %4 = vector.multi_reduction <maximumf>, %3, %cst [1] : vector<1x4x8x128xf32> to vector<1x8x128xf32>
    %5 = vector.shape_cast %4 : vector<1x8x128xf32> to vector<1x1x8x128xf32>
    %6 = vector.broadcast %5 : vector<1x1x8x128xf32> to vector<1x4x8x128xf32>
    %7 = arith.subf %3, %6 : vector<1x4x8x128xf32>
    %8 = math.exp %7 : vector<1x4x8x128xf32>
    %cst_4 = arith.constant dense<0.000000e+00> : vector<1x8x128xf32>
    %9 = vector.multi_reduction <add>, %8, %cst_4 [1] : vector<1x4x8x128xf32> to vector<1x8x128xf32>
    %10 = vector.shape_cast %9 : vector<1x8x128xf32> to vector<1x1x8x128xf32>
    %11 = tpu.reciprocal %10 {approx = true} : vector<1x1x8x128xf32> -> vector<1x1x8x128xf32>
    %12 = vector.broadcast %11 : vector<1x1x8x128xf32> to vector<1x4x8x128xf32>
    %13 = arith.mulf %8, %12 : vector<1x4x8x128xf32>
    %c0_5 = arith.constant 0 : index
    %c0_6 = arith.constant 0 : index
    %c0_7 = arith.constant 0 : index
    %c0_8 = arith.constant 0 : index
    %14 = vector.load %arg4[%c0_5, %c0_6, %c0_7, %c0_8] : memref<1x1x8x128xi32, #tpu.memory_space<vmem>>, vector<1x1x8x128xi32>
    %15 = tpu.iota {dimensions = array<i32: 1>} : vector<1x4x8x128xi32>
    %16 = vector.broadcast %14 : vector<1x1x8x128xi32> to vector<1x4x8x128xi32>
    %17 = arith.cmpi eq, %15, %16 : vector<1x4x8x128xi32>
    %18 = arith.extui %17 : vector<1x4x8x128xi1> to vector<1x4x8x128xi32>
    %19 = arith.sitofp %18 : vector<1x4x8x128xi32> to vector<1x4x8x128xf32>
    %20 = arith.mulf %13, %19 : vector<1x4x8x128xf32>
    %21 = arith.addf %13, %19 : vector<1x4x8x128xf32>
    %c1_i32 = arith.constant 1 : i32
    %22 = arith.muli %arg1, %c1_i32 : i32
    %23 = arith.addi %22, %arg2 : i32
    %c0_i32_9 = arith.constant 0 : i32
    %24 = arith.cmpi slt, %23, %c0_i32_9 : i32
    %25 = arith.extui %24 : i1 to i32
    %c0_i32_10 = arith.constant 0 : i32
    %26 = arith.cmpi ne, %25, %c0_i32_10 : i32
    scf.if %26 {
      %c0_15 = arith.constant 0 : index
      %c0_16 = arith.constant 0 : index
      %c0_17 = arith.constant 0 : index
      %c0_18 = arith.constant 0 : index
      %33 = vector.load %arg7[%c0_15, %c0_16, %c0_17, %c0_18] : memref<1x4x8x128xf32, #tpu.memory_space<vmem>>, vector<1x4x8x128xf32>
      %34 = arith.addf %33, %20 : vector<1x4x8x128xf32>
      %c0_19 = arith.constant 0 : index
      %c0_20 = arith.constant 0 : index
      %c0_21 = arith.constant 0 : index
      %c0_22 = arith.constant 0 : index
      %35 = vector.load %arg7[%c0_19, %c0_20, %c0_21, %c0_22] : memref<1x4x8x128xf32, #tpu.memory_space<vmem>>, vector<1x4x8x128xf32>
      tpu.vector_store %arg7[%c0_19, %c0_20, %c0_21, %c0_22], %34 {strides = array<i32>} : memref<1x4x8x128xf32, #tpu.memory_space<vmem>>, vector<1x4x8x128xf32>,
      %c0_23 = arith.constant 0 : index
      %c0_24 = arith.constant 0 : index
      %c0_25 = arith.constant 0 : index
      %c0_26 = arith.constant 0 : index
      %36 = vector.load %arg8[%c0_23, %c0_24, %c0_25, %c0_26] : memref<1x4x8x128xf32, #tpu.memory_space<vmem>>, vector<1x4x8x128xf32>
      %37 = arith.addf %36, %21 : vector<1x4x8x128xf32>
      %c0_27 = arith.constant 0 : index
      %c0_28 = arith.constant 0 : index
      %c0_29 = arith.constant 0 : index
      %c0_30 = arith.constant 0 : index
      %38 = vector.load %arg8[%c0_27, %c0_28, %c0_29, %c0_30] : memref<1x4x8x128xf32, #tpu.memory_space<vmem>>, vector<1x4x8x128xf32>
      tpu.vector_store %arg8[%c0_27, %c0_28, %c0_29, %c0_30], %37 {strides = array<i32>} : memref<1x4x8x128xf32, #tpu.memory_space<vmem>>, vector<1x4x8x128xf32>,
    } else {
    }
    %c0_i32_11 = arith.constant 0 : i32
    %27 = arith.cmpi sge, %23, %c0_i32_11 : i32
    %28 = arith.extui %27 : i1 to i32
    %c0_i32_12 = arith.constant 0 : i32
    %29 = arith.cmpi ne, %28, %c0_i32_12 : i32
    scf.if %29 {
      %33 = tpu.iota {dimensions = array<i32: 2>} : vector<1x1x8x128xi32>
      %34 = tpu.iota {dimensions = array<i32: 3>} : vector<1x1x8x128xi32>
      %c1024_i32 = arith.constant 1024 : i32
      %35 = arith.muli %23, %c1024_i32 : i32
      %c128_i32 = arith.constant 128 : i32
      %36 = vector.broadcast %c128_i32 : i32 to vector<1x1x8x128xi32>
      %37 = arith.muli %33, %36 : vector<1x1x8x128xi32>
      %38 = vector.broadcast %35 : i32 to vector<1x1x8x128xi32>
      %39 = arith.addi %38, %37 : vector<1x1x8x128xi32>
      %40 = arith.addi %39, %34 : vector<1x1x8x128xi32>
      %c256_i32 = arith.constant 256 : i32
      %41 = vector.broadcast %c256_i32 : i32 to vector<1x1x8x128xi32>
      %42 = arith.cmpi slt, %40, %41 : vector<1x1x8x128xi32>
      %43 = arith.extui %42 : vector<1x1x8x128xi1> to vector<1x1x8x128xi32>
      %44 = arith.sitofp %43 : vector<1x1x8x128xi32> to vector<1x1x8x128xf32>
      %c0_15 = arith.constant 0 : index
      %c0_16 = arith.constant 0 : index
      %c0_17 = arith.constant 0 : index
      %c0_18 = arith.constant 0 : index
      %45 = vector.load %arg7[%c0_15, %c0_16, %c0_17, %c0_18] : memref<1x4x8x128xf32, #tpu.memory_space<vmem>>, vector<1x4x8x128xf32>
      %46 = vector.broadcast %44 : vector<1x1x8x128xf32> to vector<1x4x8x128xf32>
      %47 = arith.mulf %20, %46 : vector<1x4x8x128xf32>
      %48 = arith.addf %45, %47 : vector<1x4x8x128xf32>
      %c0_19 = arith.constant 0 : index
      %c0_20 = arith.constant 0 : index
      %c0_21 = arith.constant 0 : index
      %c0_22 = arith.constant 0 : index
      %49 = vector.load %arg7[%c0_19, %c0_20, %c0_21, %c0_22] : memref<1x4x8x128xf32, #tpu.memory_space<vmem>>, vector<1x4x8x128xf32>
      tpu.vector_store %arg7[%c0_19, %c0_20, %c0_21, %c0_22], %48 {strides = array<i32>} : memref<1x4x8x128xf32, #tpu.memory_space<vmem>>, vector<1x4x8x128xf32>,
      %c0_23 = arith.constant 0 : index
      %c0_24 = arith.constant 0 : index
      %c0_25 = arith.constant 0 : index
      %c0_26 = arith.constant 0 : index
      %50 = vector.load %arg8[%c0_23, %c0_24, %c0_25, %c0_26] : memref<1x4x8x128xf32, #tpu.memory_space<vmem>>, vector<1x4x8x128xf32>
      %51 = vector.broadcast %44 : vector<1x1x8x128xf32> to vector<1x4x8x128xf32>
      %52 = arith.mulf %21, %51 : vector<1x4x8x128xf32>
      %53 = arith.addf %50, %52 : vector<1x4x8x128xf32>
      %c0_27 = arith.constant 0 : index
      %c0_28 = arith.constant 0 : index
      %c0_29 = arith.constant 0 : index
      %c0_30 = arith.constant 0 : index
      %54 = vector.load %arg8[%c0_27, %c0_28, %c0_29, %c0_30] : memref<1x4x8x128xf32, #tpu.memory_space<vmem>>, vector<1x4x8x128xf32>
      tpu.vector_store %arg8[%c0_27, %c0_28, %c0_29, %c0_30], %53 {strides = array<i32>} : memref<1x4x8x128xf32, #tpu.memory_space<vmem>>, vector<1x4x8x128xf32>,
    } else {
    }
    %c0_i32_13 = arith.constant 0 : i32
    %30 = arith.cmpi eq, %arg2, %c0_i32_13 : i32
    %31 = arith.extui %30 : i1 to i32
    %c0_i32_14 = arith.constant 0 : i32
    %32 = arith.cmpi ne, %31, %c0_i32_14 : i32
    scf.if %32 {
      %c0_15 = arith.constant 0 : index
      %c0_16 = arith.constant 0 : index
      %c0_17 = arith.constant 0 : index
      %c0_18 = arith.constant 0 : index
      %33 = vector.load %arg7[%c0_15, %c0_16, %c0_17, %c0_18] : memref<1x4x8x128xf32, #tpu.memory_space<vmem>>, vector<1x4x8x128xf32>
      %cst_19 = arith.constant dense<0.000000e+00> : vector<1x4x128xf32>
      %34 = vector.multi_reduction <add>, %33, %cst_19 [2] : vector<1x4x8x128xf32> to vector<1x4x128xf32>
      %c0_20 = arith.constant 0 : index
      %c0_21 = arith.constant 0 : index
      %c0_22 = arith.constant 0 : index
      %35 = vector.load %arg5[%c0_20, %c0_21, %c0_22] : memref<1x4x128xf32, #tpu.memory_space<vmem>>, vector<1x4x128xf32>
      tpu.vector_store %arg5[%c0_20, %c0_21, %c0_22], %34 {strides = array<i32>} : memref<1x4x128xf32, #tpu.memory_space<vmem>>, vector<1x4x128xf32>,
      %c0_23 = arith.constant 0 : index
      %c0_24 = arith.constant 0 : index
      %c0_25 = arith.constant 0 : index
      %c0_26 = arith.constant 0 : index
      %36 = vector.load %arg8[%c0_23, %c0_24, %c0_25, %c0_26] : memref<1x4x8x128xf32, #tpu.memory_space<vmem>>, vector<1x4x8x128xf32>
      %cst_27 = arith.constant dense<0.000000e+00> : vector<1x4x128xf32>
      %37 = vector.multi_reduction <add>, %36, %cst_27 [2] : vector<1x4x8x128xf32> to vector<1x4x128xf32>
      %c0_28 = arith.constant 0 : index
      %c0_29 = arith.constant 0 : index
      %c0_30 = arith.constant 0 : index
      %38 = vector.load %arg6[%c0_28, %c0_29, %c0_30] : memref<1x4x128xf32, #tpu.memory_space<vmem>>, vector<1x4x128xf32>
      tpu.vector_store %arg6[%c0_28, %c0_29, %c0_30], %37 {strides = array<i32>} : memref<1x4x128xf32, #tpu.memory_space<vmem>>, vector<1x4x128xf32>,
    } else {
    }
    return
  }
  func.func @transform_0(%arg0: i32, %arg1: i32, %arg2: i32) -> (i32, i32, i32, i32) {
    %c1_i32 = arith.constant 1 : i32
    %0 = arith.muli %arg1, %c1_i32 : i32
    %1 = arith.addi %0, %arg2 : i32
    %c0_i32 = arith.constant 0 : i32
    %c0_i32_0 = arith.constant 0 : i32
    %c0_i32_1 = arith.constant 0 : i32
    return %arg0, %c0_i32, %1, %c0_i32_0 : i32, i32, i32, i32
  }
  func.func @transform_1(%arg0: i32, %arg1: i32, %arg2: i32) -> (i32, i32, i32, i32) {
    %c1_i32 = arith.constant 1 : i32
    %0 = arith.muli %arg1, %c1_i32 : i32
    %1 = arith.addi %0, %arg2 : i32
    %c0_i32 = arith.constant 0 : i32
    %c0_i32_0 = arith.constant 0 : i32
    %c0_i32_1 = arith.constant 0 : i32
    return %arg0, %c0_i32, %1, %c0_i32_0 : i32, i32, i32, i32
  }
  func.func @transform_2(%arg0: i32, %arg1: i32, %arg2: i32) -> (i32, i32, i32) {
    %c1_i32 = arith.constant 1 : i32
    %0 = arith.muli %arg0, %c1_i32 : i32
    %1 = arith.addi %0, %arg1 : i32
    %c0_i32 = arith.constant 0 : i32
    %c0_i32_0 = arith.constant 0 : i32
    %c0_i32_1 = arith.constant 0 : i32
    return %1, %c0_i32, %c0_i32_0 : i32, i32, i32
  }
  func.func @transform_3(%arg0: i32, %arg1: i32, %arg2: i32) -> (i32, i32, i32) {
    %c1_i32 = arith.constant 1 : i32
    %0 = arith.muli %arg0, %c1_i32 : i32
    %1 = arith.addi %0, %arg1 : i32
    %c0_i32 = arith.constant 0 : i32
    %c0_i32_0 = arith.constant 0 : i32
    %c0_i32_1 = arith.constant 0 : i32
    return %1, %c0_i32, %c0_i32_0 : i32, i32, i32
  }
}

</mosaic_0001>

<llo_original>
// kernel: tpu_custom_call.1
$region0: #{tpu_custom_call.1}
  #allocation0 [shape = 'u32[]', space=smem, size = 0x4, offset = 0x4, fixed_abs, tag = 'smem constant byte address 0x4 - core index']
  #allocation1 [shape = 'u32[72,128]{1,0:T(1,128)}', space=vmem, size = 0x9000, scoped, tag = 'internal scratch']
  #allocation2 [shape = 'f32[1,4,8,128]{3,2,1,0:T(8,128)}', space=vmem, size = 0x4000, scoped, tag = 'scratch operand']
  #allocation3 [shape = 'f32[1,4,8,128]{3,2,1,0:T(8,128)}', space=vmem, size = 0x4000, scoped, tag = 'scratch operand']
  %s0 = inlined_call_operand.hbm [shape: f32[2,4,8,128], index: 0, kind: input, shape index: {}]
  %s1 = inlined_call_operand.hbm [shape: s32[2,1,8,128], index: 1, kind: input, shape index: {}]
  %s2 = inlined_call_operand.hbm [shape: f32[2,4,128], index: 2, kind: output, shape index: {0}]
  %s3 = inlined_call_operand.hbm [shape: f32[2,4,128], index: 3, kind: output, shape index: {1}]
  %4 = xla_tuple %s2, %s3
  %s5 = sld [smem:[#allocation0]]
  $region73: #{tpu_custom_call.1} parent=0
    _
  %s7 = ssub.s32 1, %s5
  %s8 = scalar_select 0, %s7, %s5
  $region1: #{tpu_custom_call.1} parent=0
    #allocation4 [shape = 'u8[32768]{0}', space=vmem, size = 0x8000, scoped, tag = 'input window, operand 0']
    #allocation5 [shape = 's32[2]{0}', space=sflag, size = 0x8, scoped, tag = 'scoped memory for tpu_custom_call.1']
    #allocation6 [shape = 's32[2]{0}', space=sflag, size = 0x8, scoped, tag = 'scoped memory for tpu_custom_call.1']
    #allocation7 [shape = 'u8[8192]{0}', space=vmem, size = 0x2000, scoped, tag = 'input window, operand 1']
    #allocation8 [shape = 's32[2]{0}', space=sflag, size = 0x8, scoped, tag = 'scoped memory for tpu_custom_call.1']
    #allocation9 [shape = 'u8[4096]{0}', space=vmem, size = 0x1000, scoped, tag = 'output window, operand 0']
    #allocation10 [shape = 'u8[4096]{0}', space=vmem, size = 0x1000, scoped, tag = 'output window, operand 1']
    #allocation11 [shape = 's32[2]{0}', space=sflag, size = 0x8, scoped, tag = 'scoped memory for tpu_custom_call.1']
    %9 = vsyncpa [#allocation5], 0
    %s10 = scalar_lea.sflag [#allocation5], 1
    %11 = vsyncpa %s10, 0
    %12 = vsyncpa [#allocation8], 0
    %s13 = scalar_lea.sflag [#allocation8], 1
    %14 = vsyncpa %s13, 0
    %15 = vsyncpa [#allocation6], 0
    %s16 = scalar_lea.sflag [#allocation6], 1
    %17 = vsyncpa %s16, 0
    %18 = vsyncpa [#allocation11], 0
    %s19 = scalar_lea.sflag [#allocation11], 1
    %20 = vsyncpa %s19, 0
    loop: start=0, step=1, limit=4
    $region2: #{tpu_custom_call.1} parent=1 // loop_pre_header
      _
    $region3: #{tpu_custom_call.1} parent=1 // loop_header
      %s22 = sphi 0, %s26
      %p23 = scmp.ge.s32.totalorder %s22, 4
      %s29 = sphi 0, %s48
      %s30 = sphi 0, %s44
      %s31 = sphi 0, %s40
      %s32 = sphi 0, %s29
      %s33 = sphi 0, %s30
      %s34 = sphi 0, %s31
      %s35 = sphi 0, %s32
      %s36 = sphi 0, %s33
      %s37 = sphi 0, %s34
      %s55 = sphi 0, %s57
      %s58 = sphi 0, %s55
      %s59 = sphi 0, %s58
      %s75 = sphi 0, %s59
      %s85 = sphi 0, %s87
      %s88 = sphi 0, %s85
      %s89 = sphi 0, %s88
      %s105 = sphi 0, %s89
      %s113 = sphi 0, %s115
      %s116 = sphi 0, %s113
      %s117 = sphi 0, %s116
      %s133 = sphi 0, %s117
      %s141 = sphi 0, %s143
      %s144 = sphi 0, %s141
      %s145 = sphi 0, %s144
      %s161 = sphi 0, %s145
    $region4: #{tpu_custom_call.1} parent=1 // loop_header_branch
      %25 = sbr.rel (%p23) target = $region8
    $region5: #{tpu_custom_call.1} parent=1 // loop_body
      %s27 = ssub.s32 %s22, 1
      %s28 = ssub.s32 %s22, 2
      %s38 = sadd.s32 1, %s31
      %p39 = scmp.ge.s32.totalorder %s38, 1
      %s40 = scalar_select %p39, 0, %s38
      %s41 = sadd.s32 1, %s30
      %s42 = scalar_select %p39, %s41, %s30
      %p43 = scmp.ge.s32.totalorder %s42, 1
      %s44 = scalar_select %p43, 0, %s42
      %s45 = sadd.s32 1, %s29
      %s46 = scalar_select %p43, %s45, %s29
      %p47 = scmp.ge.s32.totalorder %s46, 2
      %s48 = scalar_select %p47, 0, %s46
      %s49 = sadd.s32 %s30, %s31
      %s50 = sadd.s32 %s44, %s40
      %s51 = ssub.s32 %s29, %s48
      %s52 = ssub.s32 %s49, %s50
      %s53 = sor.u32 %s51, %s52
      %p54 = scmp.eq.s32.totalorder %s53, 0
      %s56 = sadd.s32 %s55, 1
      %s57 = scalar_select %p54, %s55, %s56
      %p60 = pneg %p54
      %p61 = scmp.eq.s32.totalorder %s22, 1
      %p62 = por %p60, %p61
      %p63 = scmp.ne.s32.totalorder %s55, %s58
      %p64 = scmp.eq.s32.totalorder %s22, 0
      %p65 = por %p63, %p64
      %p66 = scmp.ne.s32.totalorder %s55, %s58
      %p67 = scmp.eq.s32.totalorder %s27, 1
      %p68 = por %p66, %p67
      %p69 = scmp.ne.s32.totalorder %s58, %s59
      %p70 = scmp.eq.s32.totalorder %s27, 0
      %p71 = por %p69, %p70
      %p72 = scmp.ne.s32.totalorder %s58, %s59
      %p73 = scmp.eq.s32.totalorder %s28, 1
      %p74 = por %p72, %p73
      %p76 = scmp.ne.s32.totalorder %s59, %s75
      %p77 = scmp.eq.s32.totalorder %s28, 0
      %p78 = por %p76, %p77
      %s79 = sadd.s32 %s30, %s31
      %s80 = sadd.s32 %s44, %s40
      %s81 = ssub.s32 %s29, %s48
      %s82 = ssub.s32 %s79, %s80
      %s83 = sor.u32 %s81, %s82
      %p84 = scmp.eq.s32.totalorder %s83, 0
      %s86 = sadd.s32 %s85, 1
      %s87 = scalar_select %p84, %s85, %s86
      %p90 = pneg %p84
      %p91 = scmp.eq.s32.totalorder %s22, 1
      %p92 = por %p90, %p91
      %p93 = scmp.ne.s32.totalorder %s85, %s88
      %p94 = scmp.eq.s32.totalorder %s22, 0
      %p95 = por %p93, %p94
      %p96 = scmp.ne.s32.totalorder %s85, %s88
      %p97 = scmp.eq.s32.totalorder %s27, 1
      %p98 = por %p96, %p97
      %p99 = scmp.ne.s32.totalorder %s88, %s89
      %p100 = scmp.eq.s32.totalorder %s27, 0
      %p101 = por %p99, %p100
      %p102 = scmp.ne.s32.totalorder %s88, %s89
      %p103 = scmp.eq.s32.totalorder %s28, 1
      %p104 = por %p102, %p103
      %p106 = scmp.ne.s32.totalorder %s89, %s105
      %p107 = scmp.eq.s32.totalorder %s28, 0
      %p108 = por %p106, %p107
      %s109 = sadd.s32 %s29, %s30
      %s110 = sadd.s32 %s48, %s44
      %s111 = ssub.s32 %s109, %s110
      %p112 = scmp.eq.s32.totalorder %s111, 0
      %s114 = sadd.s32 %s113, 1
      %s115 = scalar_select %p112, %s113, %s114
      %p118 = pneg %p112
      %p119 = scmp.eq.s32.totalorder %s22, 1
      %p120 = por %p118, %p119
      %p121 = scmp.ne.s32.totalorder %s113, %s116
      %p122 = scmp.eq.s32.totalorder %s22, 0
      %p123 = por %p121, %p122
      %p124 = scmp.ne.s32.totalorder %s113, %s116
      %p125 = scmp.eq.s32.totalorder %s27, 1
      %p126 = por %p124, %p125
      %p127 = scmp.ne.s32.totalorder %s116, %s117
      %p128 = scmp.eq.s32.totalorder %s27, 0
      %p129 = por %p127, %p128
      %p130 = scmp.ne.s32.totalorder %s116, %s117
      %p131 = scmp.eq.s32.totalorder %s28, 1
      %p132 = por %p130, %p131
      %p134 = scmp.ne.s32.totalorder %s117, %s133
      %p135 = scmp.eq.s32.totalorder %s28, 0
      %p136 = por %p134, %p135
      %s137 = sadd.s32 %s29, %s30
      %s138 = sadd.s32 %s48, %s44
      %s139 = ssub.s32 %s137, %s138
      %p140 = scmp.eq.s32.totalorder %s139, 0
      %s142 = sadd.s32 %s141, 1
      %s143 = scalar_select %p140, %s141, %s142
      %p146 = pneg %p140
      %p147 = scmp.eq.s32.totalorder %s22, 1
      %p148 = por %p146, %p147
      %p149 = scmp.ne.s32.totalorder %s141, %s144
      %p150 = scmp.eq.s32.totalorder %s22, 0
      %p151 = por %p149, %p150
      %p152 = scmp.ne.s32.totalorder %s141, %s144
      %p153 = scmp.eq.s32.totalorder %s27, 1
      %p154 = por %p152, %p153
      %p155 = scmp.ne.s32.totalorder %s144, %s145
      %p156 = scmp.eq.s32.totalorder %s27, 0
      %p157 = por %p155, %p156
      %p158 = scmp.ne.s32.totalorder %s144, %s145
      %p159 = scmp.eq.s32.totalorder %s28, 1
      %p160 = por %p158, %p159
      %p162 = scmp.ne.s32.totalorder %s145, %s161
      %p163 = scmp.eq.s32.totalorder %s28, 0
      %p164 = por %p162, %p163
      %p165 = scmp.le.s32.totalorder 1, %s22
      %p166 = scmp.lt.s32.totalorder %s22, 3
      %p167 = pnand %p165, %p166
      %p168 = pneg %p167
      // Predicated region
      $region9: #{tpu_custom_call.1} parent=5 // pred_check
        _
      $region10: #{tpu_custom_call.1} parent=5 // pred_check_branch
        %170 = sbr.rel (%p167) target = $region12
      $region11: #{tpu_custom_call.1} parent=5 // pred_region
        %s171 = ssub.s32 %s22, 1
      $region12: #{tpu_custom_call.1} parent=5 // pred_fallthru
        _
      %p172 = scmp.lt.s32.totalorder %s22, 2
      // Predicated region
      $region13: #{tpu_custom_call.1} parent=5 // pred_check
        %p173 = pneg %p172
      $region14: #{tpu_custom_call.1} parent=5 // pred_check_branch
        %175 = sbr.rel (%p173) target = $region16
      $region15: #{tpu_custom_call.1} parent=5 // pred_region
        // Predicated region
        $region17: #{tpu_custom_call.1} parent=15 // pred_check
          %p176 = pneg %p65
        $region18: #{tpu_custom_call.1} parent=15 // pred_check_branch
          %178 = sbr.rel (%p176) target = $region20
        $region19: #{tpu_custom_call.1} parent=15 // pred_region
          %s179 = sand.u32 %s55, 1
          %s180 = scalar_lea.sflag [#allocation5], %s179
          %s181 = sand.u32 %s55, 1
          %s182 = smul.addr %s181, 32
          %s183 = scalar_lea.vmem [#allocation4], %s182
          %s184 = sadd.s32 %s30, %s31
          %186 = vsyncadd %s180, 0
          %s187 = smul.addr %s29, 4
          %s188 = sadd.s32 %s184, %s187
          %s189 = smul.addr %s188, 8
          %s190 = scalar_lea.hbm %s0, %s189
          %s191 = sshll.u32 %s190, 4
          %s192 = int_to_ptr.hbm [resolvable:$true] %s191
          %s193 = sshll.u32 %s183, 4
          %s194 = int_to_ptr.vmem [resolvable:$true] %s193
          %199 = dma.hbm_to_vmem [thread:$0]  %s192, 512, %s194, %s180, 128, 128, 8
        $region20: #{tpu_custom_call.1} parent=15 // pred_fallthru
          _
        // Predicated region
        $region21: #{tpu_custom_call.1} parent=15 // pred_check
          %p200 = pneg %p95
        $region22: #{tpu_custom_call.1} parent=15 // pred_check_branch
          %202 = sbr.rel (%p200) target = $region24
        $region23: #{tpu_custom_call.1} parent=15 // pred_region
          %s203 = sand.u32 %s85, 1
          %s204 = scalar_lea.sflag [#allocation8], %s203
          %s205 = sand.u32 %s85, 1
          %s206 = smul.addr %s205, 8
          %s207 = scalar_lea.vmem [#allocation7], %s206
          %s208 = sadd.s32 %s30, %s31
          %210 = vsyncadd %s204, 0
          %s211 = sadd.s32 %s208, %s29
          %s212 = smul.addr %s211, 8
          %s213 = scalar_lea.hbm %s1, %s212
          %s215 = sshll.u32 %s213, 4
          %s216 = int_to_ptr.hbm [resolvable:$true] %s215
          %s217 = sshll.u32 %s207, 4
          %s218 = int_to_ptr.vmem [resolvable:$true] %s217
          %220 = dma.hbm_to_vmem [thread:$0]  %s216, 128, %s218, %s204
        $region24: #{tpu_custom_call.1} parent=15 // pred_fallthru
          _
      $region16: #{tpu_custom_call.1} parent=5 // pred_fallthru
        _
      %p221 = scmp.le.s32.totalorder 1, %s22
      %p222 = scmp.lt.s32.totalorder %s22, 3
      %p223 = pnand %p221, %p222
      %p224 = pneg %p223
      // Predicated region
      $region25: #{tpu_custom_call.1} parent=5 // pred_check
        _
      $region26: #{tpu_custom_call.1} parent=5 // pred_check_branch
        %226 = sbr.rel (%p223) target = $region28
      $region27: #{tpu_custom_call.1} parent=5 // pred_region
        %s227 = ssub.s32 %s22, 1
        %s228 = sand.u32 %s58, 1
        %s229 = scalar_lea.sflag [#allocation5], %s228
        %s230 = sand.u32 %s58, 1
        %s231 = smul.addr %s230, 32
        %s232 = scalar_lea.vmem [#allocation4], %s231
        // Predicated region
        $region29: #{tpu_custom_call.1} parent=27 // pred_check
          %p233 = pneg %p71
        $region30: #{tpu_custom_call.1} parent=27 // pred_check_branch
          %235 = sbr.rel (%p233) target = $region32
        $region31: #{tpu_custom_call.1} parent=27 // pred_region
          %237 = dma.done %s229, 512
        $region32: #{tpu_custom_call.1} parent=27 // pred_fallthru
          _
        %s238 = sand.u32 %s88, 1
        %s239 = scalar_lea.sflag [#allocation8], %s238
        %s240 = sand.u32 %s88, 1
        %s241 = smul.addr %s240, 8
        %s242 = scalar_lea.vmem [#allocation7], %s241
        // Predicated region
        $region33: #{tpu_custom_call.1} parent=27 // pred_check
          %p243 = pneg %p101
        $region34: #{tpu_custom_call.1} parent=27 // pred_check_branch
          %245 = sbr.rel (%p243) target = $region36
        $region35: #{tpu_custom_call.1} parent=27 // pred_region
          %247 = dma.done %s239, 128
        $region36: #{tpu_custom_call.1} parent=27 // pred_fallthru
          _
        %s248 = sand.u32 %s58, 1
        %s249 = scalar_lea.sflag [#allocation5], %s248
        %s250 = sand.u32 %s58, 1
        %s251 = smul.addr %s250, 32
        %s252 = scalar_lea.vmem [#allocation4], %s251
        %p253 = pneg %p71
        %p254 = pneg %p68
        %s255 = sand.u32 %s88, 1
        %s256 = scalar_lea.sflag [#allocation8], %s255
        %s257 = sand.u32 %s88, 1
        %s258 = smul.addr %s257, 8
        %s259 = scalar_lea.vmem [#allocation7], %s258
        %p260 = pneg %p101
        %p261 = pneg %p98
        %p262 = pneg %p129
        %p263 = pneg %p126
        %s264 = sand.u32 %s116, 1
        %s265 = scalar_lea.sflag [#allocation6], %s264
        %s266 = sand.u32 %s116, 1
        %s267 = smul.addr %s266, 4
        %s268 = scalar_lea.vmem [#allocation9], %s267
        %p269 = pneg %p157
        %p270 = pneg %p154
        %s271 = sand.u32 %s144, 1
        %s272 = scalar_lea.sflag [#allocation11], %s271
        %s273 = sand.u32 %s144, 1
        %s274 = smul.addr %s273, 4
        %s275 = scalar_lea.vmem [#allocation10], %s274
        %s276 = sadd.s32 %s33, %s34
        %s277 = sadd.s32 %s33, %s34
        %s278 = sadd.s32 %s32, %s33
        %s279 = sadd.s32 %s32, %s33
        %p280 = scmp.eq.s32.totalorder %s34, 0
        // Predicated region
        $region37: #{tpu_custom_call.1} parent=27 // pred_check
          %p281 = pneg %p280
        $region38: #{tpu_custom_call.1} parent=27 // pred_check_branch
          %283 = sbr.rel (%p281) target = $region40
        $region39: #{tpu_custom_call.1} parent=27 // pred_region
          %284 = vst [vmem:[#allocation2] sm:$0xff] 0.0
          %285 = vst [vmem:[#allocation2 + $0x8] sm:$0xff] 0.0
          %286 = vst [vmem:[#allocation2 + $0x10] sm:$0xff] 0.0
          %287 = vst [vmem:[#allocation2 + $0x18] sm:$0xff] 0.0
          %288 = vst [vmem:[#allocation3] sm:$0xff] 0.0
          %289 = vst [vmem:[#allocation3 + $0x8] sm:$0xff] 0.0
          %290 = vst [vmem:[#allocation3 + $0x10] sm:$0xff] 0.0
          %291 = vst [vmem:[#allocation3 + $0x18] sm:$0xff] 0.0
        $region40: #{tpu_custom_call.1} parent=27 // pred_fallthru
          _
        %v292 = vld [vmem:[%s232] sm:$0xff]
        %v293 = vld [vmem:[%s232 + $0x8] sm:$0xff]
        %v294 = vld [vmem:[%s232 + $0x10] sm:$0xff]
        %v295 = vld [vmem:[%s232 + $0x18] sm:$0xff]
        %v296 = vmax.f32 %v292, %v293
        %v297 = vmax.f32 %v294, %v295
        %v298 = vmax.f32 %v296, %v297
        %v299 = vsub.f32 %v292, %v298
        %v300 = vsub.f32 %v293, %v298
        %v301 = vsub.f32 %v294, %v298
        %v302 = vsub.f32 %v295, %v298
        %v303 = vmul.f32 %v299, 1.442695
        %v304 = vpow.pop %v303
        %v305 = vmul.f32 %v300, 1.442695
        %v306 = vpow.pop %v305
        %v307 = vmul.f32 %v301, 1.442695
        %v308 = vpow.pop %v307
        %v309 = vmul.f32 %v302, 1.442695
        %v310 = vpow.pop %v309
        %v311 = vadd.f32 %v304, %v306
        %v312 = vadd.f32 %v311, %v308
        %v313 = vadd.f32 %v312, %v310
        %v314 = vrcp.pop %v313
        %v315 = vmul.f32 %v304, %v314
        %v316 = vmul.f32 %v306, %v314
        %v317 = vmul.f32 %v308, %v314
        %v318 = vmul.f32 %v310, %v314
        %v319 = vld [vmem:[%s242] sm:$0xff]
        %vm320 = vcmp.eq.s32.totalorder %v319, 0
        %vm321 = vcmp.eq.s32.totalorder %v319, 1
        %vm322 = vcmp.eq.s32.totalorder %v319, 2
        %vm323 = vcmp.eq.s32.totalorder %v319, 3
        %v324 = vsel %vm320, 1, 0
        %v325 = vsel %vm321, 1, 0
        %v326 = vsel %vm322, 1, 0
        %v327 = vsel %vm323, 1, 0
        %v328 = vcvt.s32.f32 %v324
        %v329 = vcvt.s32.f32 %v325
        %v330 = vcvt.s32.f32 %v326
        %v331 = vcvt.s32.f32 %v327
        %v332 = vmul.f32 %v315, %v328
        %v333 = vmul.f32 %v316, %v329
        %v334 = vmul.f32 %v317, %v330
        %v335 = vmul.f32 %v318, %v331
        %v336 = vadd.f32 %v315, %v328
        %v337 = vadd.f32 %v316, %v329
        %v338 = vadd.f32 %v317, %v330
        %v339 = vadd.f32 %v318, %v331
        %s340 = sadd.s32 %s33, %s34
        %p341 = scmp.lt.s32.totalorder %s340, 0
        // Predicated region
        $region41: #{tpu_custom_call.1} parent=27 // pred_check
          %p342 = pneg %p341
        $region42: #{tpu_custom_call.1} parent=27 // pred_check_branch
          %344 = sbr.rel (%p342) target = $region44
        $region43: #{tpu_custom_call.1} parent=27 // pred_region
          %v345 = vld [vmem:[#allocation2] sm:$0xff]
          %v346 = vld [vmem:[#allocation2 + $0x8] sm:$0xff]
          %v347 = vld [vmem:[#allocation2 + $0x10] sm:$0xff]
          %v348 = vld [vmem:[#allocation2 + $0x18] sm:$0xff]
          %v349 = vadd.f32 %v345, %v332
          %v350 = vadd.f32 %v346, %v333
          %v351 = vadd.f32 %v347, %v334
          %v352 = vadd.f32 %v348, %v335
          %353 = vst [vmem:[#allocation2] sm:$0xff] %v349
          %354 = vst [vmem:[#allocation2 + $0x8] sm:$0xff] %v350
          %355 = vst [vmem:[#allocation2 + $0x10] sm:$0xff] %v351
          %356 = vst [vmem:[#allocation2 + $0x18] sm:$0xff] %v352
          %v357 = vld [vmem:[#allocation3] sm:$0xff]
          %v358 = vld [vmem:[#allocation3 + $0x8] sm:$0xff]
          %v359 = vld [vmem:[#allocation3 + $0x10] sm:$0xff]
          %v360 = vld [vmem:[#allocation3 + $0x18] sm:$0xff]
          %v361 = vadd.f32 %v357, %v336
          %v362 = vadd.f32 %v358, %v337
          %v363 = vadd.f32 %v359, %v338
          %v364 = vadd.f32 %v360, %v339
          %365 = vst [vmem:[#allocation3] sm:$0xff] %v361
          %366 = vst [vmem:[#allocation3 + $0x8] sm:$0xff] %v362
          %367 = vst [vmem:[#allocation3 + $0x10] sm:$0xff] %v363
          %368 = vst [vmem:[#allocation3 + $0x18] sm:$0xff] %v364
        $region44: #{tpu_custom_call.1} parent=27 // pred_fallthru
          _
        %p369 = scmp.ge.s32.totalorder %s340, 0
        // Predicated region
        $region45: #{tpu_custom_call.1} parent=27 // pred_check
          %p370 = pneg %p369
        $region46: #{tpu_custom_call.1} parent=27 // pred_check_branch
          %372 = sbr.rel (%p370) target = $region48
        $region47: #{tpu_custom_call.1} parent=27 // pred_region
          %v373 = vlaneseq
          %v374 = vshrl.u32 %v373, 7
          %v375 = vlaneseq
          %v376 = vand.u32 %v375, 127
          %s377 = smul.u32 %s340, 1024
          %v378 = vmul.u32 %v374, 128
          %v379 = vstv %s377
          %v380 = vadd.s32 %v379, %v378
          %v381 = vadd.s32 %v380, %v376
          %vm382 = vcmp.lt.s32.totalorder %v381, 256
          %v383 = vsel %vm382, 1, 0
          %v384 = vcvt.s32.f32 %v383
          %v385 = vld [vmem:[#allocation2] sm:$0xff]
          %v386 = vld [vmem:[#allocation2 + $0x8] sm:$0xff]
          %v387 = vld [vmem:[#allocation2 + $0x10] sm:$0xff]
          %v388 = vld [vmem:[#allocation2 + $0x18] sm:$0xff]
          %v389 = vmul.f32 %v332, %v384
          %v390 = vmul.f32 %v333, %v384
          %v391 = vmul.f32 %v334, %v384
          %v392 = vmul.f32 %v335, %v384
          %v393 = vadd.f32 %v385, %v389
          %v394 = vadd.f32 %v386, %v390
          %v395 = vadd.f32 %v387, %v391
          %v396 = vadd.f32 %v388, %v392
          %397 = vst [vmem:[#allocation2] sm:$0xff] %v393
          %398 = vst [vmem:[#allocation2 + $0x8] sm:$0xff] %v394
          %399 = vst [vmem:[#allocation2 + $0x10] sm:$0xff] %v395
          %400 = vst [vmem:[#allocation2 + $0x18] sm:$0xff] %v396
          %v401 = vld [vmem:[#allocation3] sm:$0xff]
          %v402 = vld [vmem:[#allocation3 + $0x8] sm:$0xff]
          %v403 = vld [vmem:[#allocation3 + $0x10] sm:$0xff]
          %v404 = vld [vmem:[#allocation3 + $0x18] sm:$0xff]
          %v405 = vmul.f32 %v336, %v384
          %v406 = vmul.f32 %v337, %v384
          %v407 = vmul.f32 %v338, %v384
          %v408 = vmul.f32 %v339, %v384
          %v409 = vadd.f32 %v401, %v405
          %v410 = vadd.f32 %v402, %v406
          %v411 = vadd.f32 %v403, %v407
          %v412 = vadd.f32 %v404, %v408
          %413 = vst [vmem:[#allocation3] sm:$0xff] %v409
          %414 = vst [vmem:[#allocation3 + $0x8] sm:$0xff] %v410
          %415 = vst [vmem:[#allocation3 + $0x10] sm:$0xff] %v411
          %416 = vst [vmem:[#allocation3 + $0x18] sm:$0xff] %v412
        $region48: #{tpu_custom_call.1} parent=27 // pred_fallthru
          _
        // Predicated region
        $region49: #{tpu_custom_call.1} parent=27 // pred_check
          %p417 = pneg %p280
        $region50: #{tpu_custom_call.1} parent=27 // pred_check_branch
          %419 = sbr.rel (%p417) target = $region52
        $region51: #{tpu_custom_call.1} parent=27 // pred_region
          %v420 = vld [vmem:[#allocation2] sm:$0xff]
          %v421 = vld [vmem:[#allocation2 + $0x8] sm:$0xff]
          %v422 = vld [vmem:[#allocation2 + $0x10] sm:$0xff]
          %v423 = vld [vmem:[#allocation2 + $0x18] sm:$0xff]
          %v424 = vrot.slane %v420, 4
          %v425 = vadd.f32 %v420, %v424
          %v426 = vrot.slane %v425, 2
          %v427 = vadd.f32 %v425, %v426
          %v428 = vrot.slane %v427, 1
          %v429 = vadd.f32 %v427, %v428
          %v430 = vrot.slane %v421, 4
          %v431 = vadd.f32 %v421, %v430
          %v432 = vrot.slane %v431, 2
          %v433 = vadd.f32 %v431, %v432
          %v434 = vrot.slane %v433, 1
          %v435 = vadd.f32 %v433, %v434
          %v436 = vrot.slane %v422, 4
          %v437 = vadd.f32 %v422, %v436
          %v438 = vrot.slane %v437, 2
          %v439 = vadd.f32 %v437, %v438
          %v440 = vrot.slane %v439, 1
          %v441 = vadd.f32 %v439, %v440
          %v442 = vrot.slane %v423, 4
          %v443 = vadd.f32 %v423, %v442
          %v444 = vrot.slane %v443, 2
          %v445 = vadd.f32 %v443, %v444
          %v446 = vrot.slane %v445, 1
          %v447 = vadd.f32 %v445, %v446
          %vm452 = vcmask 1041409
          %v453 = vsel %vm452, %v435, %v429
          %vm454 = vcmask 1042434
          %v455 = vsel %vm454, %v441, %v453
          %vm456 = vcmask 1043459
          %v457 = vsel %vm456, %v447, %v455
          %459 = vst [vmem:[%s268] sm:$0xf] %v457
          %v460 = vld [vmem:[#allocation3] sm:$0xff]
          %v461 = vld [vmem:[#allocation3 + $0x8] sm:$0xff]
          %v462 = vld [vmem:[#allocation3 + $0x10] sm:$0xff]
          %v463 = vld [vmem:[#allocation3 + $0x18] sm:$0xff]
          %v464 = vrot.slane %v460, 4
          %v465 = vadd.f32 %v460, %v464
          %v466 = vrot.slane %v465, 2
          %v467 = vadd.f32 %v465, %v466
          %v468 = vrot.slane %v467, 1
          %v469 = vadd.f32 %v467, %v468
          %v470 = vrot.slane %v461, 4
          %v471 = vadd.f32 %v461, %v470
          %v472 = vrot.slane %v471, 2
          %v473 = vadd.f32 %v471, %v472
          %v474 = vrot.slane %v473, 1
          %v475 = vadd.f32 %v473, %v474
          %v476 = vrot.slane %v462, 4
          %v477 = vadd.f32 %v462, %v476
          %v478 = vrot.slane %v477, 2
          %v479 = vadd.f32 %v477, %v478
          %v480 = vrot.slane %v479, 1
          %v481 = vadd.f32 %v479, %v480
          %v482 = vrot.slane %v463, 4
          %v483 = vadd.f32 %v463, %v482
          %v484 = vrot.slane %v483, 2
          %v485 = vadd.f32 %v483, %v484
          %v486 = vrot.slane %v485, 1
          %v487 = vadd.f32 %v485, %v486
          %v492 = vsel %vm452, %v475, %v469
          %v493 = vsel %vm454, %v481, %v492
          %v494 = vsel %vm456, %v487, %v493
          %496 = vst [vmem:[%s275] sm:$0xf] %v494
        $region52: #{tpu_custom_call.1} parent=27 // pred_fallthru
          _
        %s497 = sand.u32 %s116, 1
        %s498 = scalar_lea.sflag [#allocation6], %s497
        %s499 = sand.u32 %s116, 1
        %s500 = smul.addr %s499, 4
        %s501 = scalar_lea.vmem [#allocation9], %s500
        %s502 = sand.u32 %s144, 1
        %s503 = scalar_lea.sflag [#allocation11], %s502
        %s504 = sand.u32 %s144, 1
        %s505 = smul.addr %s504, 4
        %s506 = scalar_lea.vmem [#allocation10], %s505
        // Predicated region
        $region53: #{tpu_custom_call.1} parent=27 // pred_check
          %p507 = pneg %p126
        $region54: #{tpu_custom_call.1} parent=27 // pred_check_branch
          %509 = sbr.rel (%p507) target = $region56
        $region55: #{tpu_custom_call.1} parent=27 // pred_region
          %s510 = sadd.s32 %s32, %s33
          %512 = vsyncadd %s498, 0
          %s513 = smul.addr %s510, 4
          %s514 = scalar_lea.hbm %s2, %s513
          %s516 = sshll.u32 %s501, 4
          %s517 = int_to_ptr.vmem [resolvable:$true] %s516
          %s518 = sshll.u32 %s514, 4
          %s519 = int_to_ptr.hbm [resolvable:$true] %s518
          %521 = dma.vmem_to_hbm [thread:$0]  %s517, 64, %s519, %s498
        $region56: #{tpu_custom_call.1} parent=27 // pred_fallthru
          _
        // Predicated region
        $region57: #{tpu_custom_call.1} parent=27 // pred_check
          %p522 = pneg %p154
        $region58: #{tpu_custom_call.1} parent=27 // pred_check_branch
          %524 = sbr.rel (%p522) target = $region60
        $region59: #{tpu_custom_call.1} parent=27 // pred_region
          %s525 = sadd.s32 %s32, %s33
          %527 = vsyncadd %s503, 0
          %s528 = smul.addr %s525, 4
          %s529 = scalar_lea.hbm %s3, %s528
          %s531 = sshll.u32 %s506, 4
          %s532 = int_to_ptr.vmem [resolvable:$true] %s531
          %s533 = sshll.u32 %s529, 4
          %s534 = int_to_ptr.hbm [resolvable:$true] %s533
          %536 = dma.vmem_to_hbm [thread:$0]  %s532, 64, %s534, %s503
        $region60: #{tpu_custom_call.1} parent=27 // pred_fallthru
          _
      $region28: #{tpu_custom_call.1} parent=5 // pred_fallthru
        _
      %p537 = scmp.le.s32.totalorder 2, %s22
      // Predicated region
      $region61: #{tpu_custom_call.1} parent=5 // pred_check
        %p538 = pneg %p537
      $region62: #{tpu_custom_call.1} parent=5 // pred_check_branch
        %540 = sbr.rel (%p538) target = $region64
      $region63: #{tpu_custom_call.1} parent=5 // pred_region
        %s541 = ssub.s32 %s22, 2
        // Predicated region
        $region65: #{tpu_custom_call.1} parent=63 // pred_check
          %p542 = pneg %p132
        $region66: #{tpu_custom_call.1} parent=63 // pred_check_branch
          %544 = sbr.rel (%p542) target = $region68
        $region67: #{tpu_custom_call.1} parent=63 // pred_region
          %s545 = sand.u32 %s117, 1
          %s546 = scalar_lea.sflag [#allocation6], %s545
          %s547 = sand.u32 %s117, 1
          %s548 = smul.addr %s547, 4
          %s549 = scalar_lea.vmem [#allocation9], %s548
          %551 = dma.done %s546, 64
        $region68: #{tpu_custom_call.1} parent=63 // pred_fallthru
          _
        // Predicated region
        $region69: #{tpu_custom_call.1} parent=63 // pred_check
          %p552 = pneg %p160
        $region70: #{tpu_custom_call.1} parent=63 // pred_check_branch
          %554 = sbr.rel (%p552) target = $region72
        $region71: #{tpu_custom_call.1} parent=63 // pred_region
          %s555 = sand.u32 %s145, 1
          %s556 = scalar_lea.sflag [#allocation11], %s555
          %s557 = sand.u32 %s145, 1
          %s558 = smul.addr %s557, 4
          %s559 = scalar_lea.vmem [#allocation10], %s558
          %561 = dma.done %s556, 64
        $region72: #{tpu_custom_call.1} parent=63 // pred_fallthru
          _
      $region64: #{tpu_custom_call.1} parent=5 // pred_fallthru
        _
    $region6: #{tpu_custom_call.1} parent=1 // loop_footer
      %s26 = sadd.s32 1, %s22
    $region7: #{tpu_custom_call.1} parent=1 // loop_footer_branch
      %21 = sbr.rel target = $region3
    $region8: #{tpu_custom_call.1} parent=1 // loop_exit
      _
    %562 = vsyncpa [#allocation5], 1
    %s563 = scalar_lea.sflag [#allocation5], 1
    %564 = vsyncpa %s563, 1
    %565 = vsyncpa [#allocation8], 1
    %s566 = scalar_lea.sflag [#allocation8], 1
    %567 = vsyncpa %s566, 1
    %568 = vsyncpa [#allocation6], 1
    %s569 = scalar_lea.sflag [#allocation6], 1
    %570 = vsyncpa %s569, 1
    %571 = vsyncpa [#allocation11], 1
    %s572 = scalar_lea.sflag [#allocation11], 1
    %573 = vsyncpa %s572, 1

</llo_original>
